<compile_context>
chip_gen: v6e
topology: v6e:2x2x1
jax: 0.10.0
libtpu: 0.0.40
codegen_flags: <defaults>
</compile_context>

<pallas_src>
import jax
import jax.numpy as jnp
from jax import lax
from jax.experimental import pallas as pl
from jax.experimental.pallas import tpu as pltpu


def _make_rrrb_kernel(H, W, B):
    """Build the kernel closure for static image size H x W and batch B."""
    HW = H * W
    # Lane padding on each side of the flattened spatial axis.  Must be >= W+1 so that
    # every 3x3 tap offset ((di-1)*W + (dj-1)) stays a valid static slice; rounded up
    # to a multiple of 128 so the concatenation below is lane-aligned (free placement).
    PAD = ((W + 1 + 127) // 128) * 128

    def kernel(x_ref, w0_ref, b0_ref, w1_ref, b1_ref, w2_ref, b2_ref, o_ref):
        # x_ref: (B, Cin, H*W)   o_ref: (B, Cin, H*W)
        # w0: (mid, Cin)  w1: (mid, 9*mid)  w2: (Cin, mid)  biases: (C, 1)
        mid = w0_ref.shape[0]

        w0 = w0_ref[...]
        w1 = w1_ref[...]
        w2 = w2_ref[...]
        b0 = b0_ref[...]            # (mid, 1)
        b1 = b1_ref[...]            # (mid, 1)
        b2 = b2_ref[...]            # (Cin, 1)

        # Column index of every flattened pixel (hoisted; shared by all taps/batches).
        col = lax.broadcasted_iota(jnp.int32, (1, HW), 1) % W
        left_edge = jnp.broadcast_to(col == 0, (mid, HW))
        right_edge = jnp.broadcast_to(col == W - 1, (mid, HW))

        # Hoisted bias broadcasts (JAX does not CSE broadcast_in_dim).
        b0_row = jnp.broadcast_to(b0, (mid, HW))
        b0_pad = jnp.broadcast_to(b0, (mid, PAD))

        for b in range(B):                      # B is small & static: unrolled
            x = x_ref[b].astype(jnp.float32)    # (Cin, HW)

            # ---- conv_expand: 1x1 conv == channel matmul (lanes = H*W, dense) ----
            out0 = jnp.dot(w0, x, preferred_element_type=jnp.float32) + b0  # (mid, HW)

            # b0-padded lane buffer: rows that fall outside the image read b0 directly;
            # only the left/right column wrap-arounds need masking below.
            buf = jnp.concatenate([b0_pad, out0, b0_pad], axis=1)  # (mid, HW + 2*PAD)

            # ---- conv_feat: 9 shifted taps as static lane slices, fused matmul ----
            slabs = []
            for di in range(3):
                for dj in range(3):
                    start = PAD + (di - 1) * W + (dj - 1)
                    slab = buf[:, start:start + HW]          # (mid, HW)
                    if dj == 0:       # tap reaches one column to the left
                        slab = jnp.where(left_edge, b0_row, slab)
                    elif dj == 2:     # tap reaches one column to the right
                        slab = jnp.where(right_edge, b0_row, slab)
                    slabs.append(slab)
            taps = jnp.concatenate(slabs, axis=0)            # (9*mid, HW)
            out1 = (jnp.dot(w1, taps, preferred_element_type=jnp.float32)
                    + b1 + out0)                             # + bias + out_identity

            # ---- conv_reduce + outer residual ----
            out2 = jnp.dot(w2, out1, preferred_element_type=jnp.float32) + b2 + x
            o_ref[b] = out2.astype(o_ref.dtype)

    return kernel


@jax.jit
def rrrb_pallas(x_nchw, k0, b0, k1, b1, k2, b2):
    """x_nchw: (B, Cin, H, W); k0/k1/k2 biases in PyTorch OIHW / (C,) layouts."""
    B, Cin, H, W = x_nchw.shape
    mid = k0.shape[0]
    HW = H * W

    # Free, contiguous reshape (no transpose): channels stay in the sublane axis,
    # the flattened spatial axis (H*W) becomes the lane axis.
    x_flat = x_nchw.reshape(B, Cin, HW)

    # Weight conversions (tiny, fused under jit):
    w0 = k0[:, :, 0, 0]                                        # (mid, Cin)
    w1 = jnp.transpose(k1, (0, 2, 3, 1)).reshape(mid, 9 * mid)  # (mid, 9*mid), tap-major
    w2 = k2[:, :, 0, 0]                                        # (Cin, mid)
    b0c = b0.reshape(mid, 1)
    b1c = b1.reshape(mid, 1)
    b2c = b2.reshape(Cin, 1)

    kernel = _make_rrrb_kernel(H, W, B)

    flops = 2 * B * HW * mid * (Cin + 9 * mid + Cin) + 6 * B * HW * mid
    bytes_accessed = 4 * (2 * B * Cin * HW
                          + 2 * mid * Cin + 9 * mid * mid + 2 * mid + Cin)
    cost = pl.CostEstimate(flops=int(flops), transcendentals=0,
                           bytes_accessed=int(bytes_accessed))

    out_flat = pl.pallas_call(
        kernel,
        out_shape=jax.ShapeDtypeStruct((B, Cin, HW), x_nchw.dtype),
        grid_spec=pltpu.PrefetchScalarGridSpec(
            num_scalar_prefetch=0,
            grid=(1,),                       # whole (tiny) problem in one block
            in_specs=[
                pl.BlockSpec((B, Cin, HW), lambda i: (0, 0, 0)),
                pl.BlockSpec((mid, Cin), lambda i: (0, 0)),
                pl.BlockSpec((mid, 1), lambda i: (0, 0)),
                pl.BlockSpec((mid, 9 * mid), lambda i: (0, 0)),
                pl.BlockSpec((mid, 1), lambda i: (0, 0)),
                pl.BlockSpec((Cin, mid), lambda i: (0, 0)),
                pl.BlockSpec((Cin, 1), lambda i: (0, 0)),
            ],
            out_specs=pl.BlockSpec((B, Cin, HW), lambda i: (0, 0, 0)),
        ),
        compiler_params=pltpu.CompilerParams(
            dimension_semantics=("arbitrary",)),
        cost_estimate=cost,
    )(x_flat, w0, b0c, w1, b1c, w2, b2c)

    return out_flat.reshape(B, Cin, H, W)


# ---------------- pure-JAX reference (NCHW, mirrors the PyTorch code) ----------------
def rrrb_ref(x, k0, b0, k1, b1, k2, b2):
    """x NCHW; k0/k1/k2 in PyTorch OIHW layout."""
    dn = ('NCHW', 'OIHW', 'NCHW')
    out = lax.conv_general_dilated(x, k0, (1, 1), 'VALID', dimension_numbers=dn)
    out = out + b0[None, :, None, None]
    out_identity = out
    padded = jnp.pad(out, ((0, 0), (0, 0), (1, 1), (1, 1)))
    b0b = jnp.broadcast_to(b0[None, :, None, None], padded.shape)
    padded = padded.at[:, :, 0:1, :].set(b0b[:, :, 0:1, :])
    padded = padded.at[:, :, -1:, :].set(b0b[:, :, -1:, :])
    padded = padded.at[:, :, :, 0:1].set(b0b[:, :, :, 0:1])
    padded = padded.at[:, :, :, -1:].set(b0b[:, :, :, -1:])
    out = lax.conv_general_dilated(padded, k1, (1, 1), 'VALID', dimension_numbers=dn)
    out = out + b1[None, :, None, None] + out_identity
    out = lax.conv_general_dilated(out, k2, (1, 1), 'VALID', dimension_numbers=dn)
    out = out + b2[None, :, None, None]
    return out + x


if __name__ == "__main__":
    # Small shapes consistent with the module: n_feats=4, ratio=2 -> mid_ch=8
    B, n_feats, H, W = 2, 4, 16, 16
    ratio = 2
    mid = n_feats * ratio

    key = jax.random.PRNGKey(0)
    ks = jax.random.split(key, 7)

    # PyTorch-layout params (OIHW), deterministically initialized in-script.
    k0 = jax.random.normal(ks[0], (mid, n_feats, 1, 1), jnp.float32) * 0.1
    b0 = jax.random.normal(ks[1], (mid,), jnp.float32) * 0.1
    k1 = jax.random.normal(ks[2], (mid, mid, 3, 3), jnp.float32) * 0.1
    b1 = jax.random.normal(ks[3], (mid,), jnp.float32) * 0.1
    k2 = jax.random.normal(ks[4], (n_feats, mid, 1, 1), jnp.float32) * 0.1
    b2 = jax.random.normal(ks[5], (n_feats,), jnp.float32) * 0.1

    x = jax.random.normal(ks[6], (B, n_feats, H, W), jnp.float32)

    out = rrrb_pallas(x, k0, b0, k1, b1, k2, b2)
    out = jax.block_until_ready(out)

    ref = rrrb_ref(x, k0, b0, k1, b1, k2, b2)
    assert out.shape == ref.shape == (B, n_feats, H, W)
    assert jnp.allclose(out, ref, atol=1e-4, rtol=1e-4), float(jnp.max(jnp.abs(out - ref)))

    # TODO(synk): fuse_model()/conv_fused reparameterized inference path is not
    # implemented here (the default unfused forward is what this kernel covers).
    print("KERNEL_OK")
</pallas_src>

<mosaic_0001>
module attributes {stable_mosaic.version = 11 : i64} {
  func.func @kernel(%arg0: i32, %arg1: memref<2x4x256xf32, #tpu.memory_space<vmem>>, %arg2: memref<8x4xf32, #tpu.memory_space<vmem>>, %arg3: memref<8x1xf32, #tpu.memory_space<vmem>>, %arg4: memref<8x72xf32, #tpu.memory_space<vmem>>, %arg5: memref<8x1xf32, #tpu.memory_space<vmem>>, %arg6: memref<4x8xf32, #tpu.memory_space<vmem>>, %arg7: memref<4x1xf32, #tpu.memory_space<vmem>>, %arg8: memref<2x4x256xf32, #tpu.memory_space<vmem>>) attributes {dimension_semantics = [#tpu.dimension_semantics<arbitrary>], iteration_bounds = array<i64: 1>, scalar_prefetch = 0 : i64, scratch_operands = 0 : i64, tpu.core_type = #tpu.core_type<tc>, window_params = [{pipeline_mode = #tpu.pipeline_mode<synchronous>, transform_indices = @transform_0, window_bounds = array<i64: 2, 4, 256>}, {pipeline_mode = #tpu.pipeline_mode<synchronous>, transform_indices = @transform_1, window_bounds = array<i64: 8, 4>}, {pipeline_mode = #tpu.pipeline_mode<synchronous>, transform_indices = @transform_2, window_bounds = array<i64: 8, 1>}, {pipeline_mode = #tpu.pipeline_mode<synchronous>, transform_indices = @transform_3, window_bounds = array<i64: 8, 72>}, {pipeline_mode = #tpu.pipeline_mode<synchronous>, transform_indices = @transform_4, window_bounds = array<i64: 8, 1>}, {pipeline_mode = #tpu.pipeline_mode<synchronous>, transform_indices = @transform_5, window_bounds = array<i64: 4, 8>}, {pipeline_mode = #tpu.pipeline_mode<synchronous>, transform_indices = @transform_6, window_bounds = array<i64: 4, 1>}, {pipeline_mode = #tpu.pipeline_mode<synchronous>, transform_indices = @transform_7, window_bounds = array<i64: 2, 4, 256>}]} {
    %c0 = arith.constant 0 : index
    %c0_0 = arith.constant 0 : index
    %0 = vector.load %arg2[%c0, %c0_0] : memref<8x4xf32, #tpu.memory_space<vmem>>, vector<8x4xf32>
    %c0_1 = arith.constant 0 : index
    %c0_2 = arith.constant 0 : index
    %1 = vector.load %arg4[%c0_1, %c0_2] : memref<8x72xf32, #tpu.memory_space<vmem>>, vector<8x72xf32>
    %c0_3 = arith.constant 0 : index
    %c0_4 = arith.constant 0 : index
    %2 = vector.load %arg6[%c0_3, %c0_4] : memref<4x8xf32, #tpu.memory_space<vmem>>, vector<4x8xf32>
    %c0_5 = arith.constant 0 : index
    %c0_6 = arith.constant 0 : index
    %3 = vector.load %arg3[%c0_5, %c0_6] : memref<8x1xf32, #tpu.memory_space<vmem>>, vector<8x1xf32>
    %c0_7 = arith.constant 0 : index
    %c0_8 = arith.constant 0 : index
    %4 = vector.load %arg5[%c0_7, %c0_8] : memref<8x1xf32, #tpu.memory_space<vmem>>, vector<8x1xf32>
    %c0_9 = arith.constant 0 : index
    %c0_10 = arith.constant 0 : index
    %5 = vector.load %arg7[%c0_9, %c0_10] : memref<4x1xf32, #tpu.memory_space<vmem>>, vector<4x1xf32>
    %6 = tpu.iota {dimensions = array<i32: 1>} : vector<1x256xi32>
    %c16_i32 = arith.constant 16 : i32
    %c0_i32 = arith.constant 0 : i32
    %7 = arith.cmpi eq, %c16_i32, %c0_i32 : i32
    %c1_i32 = arith.constant 1 : i32
    %8 = arith.select %7, %c1_i32, %c16_i32 : i32
    %9 = vector.broadcast %8 : i32 to vector<1x256xi32>
    %10 = arith.remsi %6, %9 : vector<1x256xi32>
    %c0_i32_11 = arith.constant 0 : i32
    %11 = vector.broadcast %c0_i32_11 : i32 to vector<1x256xi32>
    %12 = arith.cmpi ne, %10, %11 : vector<1x256xi32>
    %c0_i32_12 = arith.constant 0 : i32
    %13 = vector.broadcast %c0_i32_12 : i32 to vector<1x256xi32>
    %14 = arith.cmpi slt, %10, %13 : vector<1x256xi32>
    %c0_i32_13 = arith.constant 0 : i32
    %15 = arith.cmpi slt, %8, %c0_i32_13 : i32
    %16 = vector.broadcast %15 : i1 to vector<1x256xi1>
    %17 = vector.broadcast %16 : vector<1x256xi1> to vector<1x256xi1>
    %18 = arith.xori %14, %17 : vector<1x256xi1>
    %19 = arith.andi %18, %12 : vector<1x256xi1>
    %20 = vector.broadcast %8 : i32 to vector<1x256xi32>
    %21 = arith.addi %10, %20 : vector<1x256xi32>
    %22 = arith.select %19, %21, %10 : vector<1x256xi1>, vector<1x256xi32>
    %c0_i32_14 = arith.constant 0 : i32
    %23 = vector.broadcast %c0_i32_14 : i32 to vector<1x256xi32>
    %24 = arith.cmpi eq, %22, %23 : vector<1x256xi32>
    %25 = vector.shape_cast %24 : vector<1x256xi1> to vector<1x256xi1>
    %26 = vector.broadcast %25 : vector<1x256xi1> to vector<8x256xi1>
    %c15_i32 = arith.constant 15 : i32
    %27 = vector.broadcast %c15_i32 : i32 to vector<1x256xi32>
    %28 = arith.cmpi eq, %22, %27 : vector<1x256xi32>
    %29 = vector.shape_cast %28 : vector<1x256xi1> to vector<1x256xi1>
    %30 = vector.broadcast %29 : vector<1x256xi1> to vector<8x256xi1>
    %31 = vector.shape_cast %3 : vector<8x1xf32> to vector<8x1xf32>
    %32 = vector.broadcast %31 : vector<8x1xf32> to vector<8x256xf32>
    %33 = vector.shape_cast %3 : vector<8x1xf32> to vector<8x1xf32>
    %34 = vector.broadcast %33 : vector<8x1xf32> to vector<8x128xf32>
    %c0_15 = arith.constant 0 : index
    %c0_16 = arith.constant 0 : index
    %c0_17 = arith.constant 0 : index
    %35 = vector.load %arg1[%c0_15, %c0_16, %c0_17] : memref<2x4x256xf32, #tpu.memory_space<vmem>>, vector<1x4x256xf32>
    %36 = vector.shape_cast %35 : vector<1x4x256xf32> to vector<4x256xf32>
    %cst = arith.constant dense<0.000000e+00> : vector<8x256xf32>
    %37 = tpu.matmul %0, %36, %cst {dimension_numbers = #tpu.dot_dimension_numbers<[1], [0], [0], [1], [0, 0, 1, 1], [], []>} : vector<8x4xf32>, vector<4x256xf32>, vector<8x256xf32> -> vector<8x256xf32>
    %38 = vector.broadcast %3 : vector<8x1xf32> to vector<8x256xf32>
    %39 = arith.addf %37, %38 : vector<8x256xf32>
    %40 = tpu.concatenate %34, %39, %34 in 1 : vector<8x128xf32>, vector<8x256xf32>, vector<8x128xf32> -> vector<8x512xf32>
    %41 = vector.extract_strided_slice %40 {offsets = [0, 111], sizes = [8, 256], strides = [1, 1]} : vector<8x512xf32> to vector<8x256xf32>
    %42 = arith.select %26, %32, %41 : vector<8x256xi1>, vector<8x256xf32>
    %43 = vector.extract_strided_slice %40 {offsets = [0, 112], sizes = [8, 256], strides = [1, 1]} : vector<8x512xf32> to vector<8x256xf32>
    %44 = vector.extract_strided_slice %40 {offsets = [0, 113], sizes = [8, 256], strides = [1, 1]} : vector<8x512xf32> to vector<8x256xf32>
    %45 = arith.select %30, %32, %44 : vector<8x256xi1>, vector<8x256xf32>
    %46 = vector.extract_strided_slice %40 {offsets = [0, 127], sizes = [8, 256], strides = [1, 1]} : vector<8x512xf32> to vector<8x256xf32>
    %47 = arith.select %26, %32, %46 : vector<8x256xi1>, vector<8x256xf32>
    %48 = vector.extract_strided_slice %40 {offsets = [0, 128], sizes = [8, 256], strides = [1, 1]} : vector<8x512xf32> to vector<8x256xf32>
    %49 = vector.extract_strided_slice %40 {offsets = [0, 129], sizes = [8, 256], strides = [1, 1]} : vector<8x512xf32> to vector<8x256xf32>
    %50 = arith.select %30, %32, %49 : vector<8x256xi1>, vector<8x256xf32>
    %51 = vector.extract_strided_slice %40 {offsets = [0, 143], sizes = [8, 256], strides = [1, 1]} : vector<8x512xf32> to vector<8x256xf32>
    %52 = arith.select %26, %32, %51 : vector<8x256xi1>, vector<8x256xf32>
    %53 = vector.extract_strided_slice %40 {offsets = [0, 144], sizes = [8, 256], strides = [1, 1]} : vector<8x512xf32> to vector<8x256xf32>
    %54 = vector.extract_strided_slice %40 {offsets = [0, 145], sizes = [8, 256], strides = [1, 1]} : vector<8x512xf32> to vector<8x256xf32>
    %55 = arith.select %30, %32, %54 : vector<8x256xi1>, vector<8x256xf32>
    %56 = tpu.concatenate %42, %43, %45, %47, %48, %50, %52, %53, %55 in 0 : vector<8x256xf32>, vector<8x256xf32>, vector<8x256xf32>, vector<8x256xf32>, vector<8x256xf32>, vector<8x256xf32>, vector<8x256xf32>, vector<8x256xf32>, vector<8x256xf32> -> vector<72x256xf32>
    %cst_18 = arith.constant dense<0.000000e+00> : vector<8x256xf32>
    %57 = tpu.matmul %1, %56, %cst_18 {dimension_numbers = #tpu.dot_dimension_numbers<[1], [0], [0], [1], [0, 0, 1, 1], [], []>} : vector<8x72xf32>, vector<72x256xf32>, vector<8x256xf32> -> vector<8x256xf32>
    %58 = vector.broadcast %4 : vector<8x1xf32> to vector<8x256xf32>
    %59 = arith.addf %57, %58 : vector<8x256xf32>
    %60 = arith.addf %59, %39 : vector<8x256xf32>
    %cst_19 = arith.constant dense<0.000000e+00> : vector<4x256xf32>
    %61 = tpu.matmul %2, %60, %cst_19 {dimension_numbers = #tpu.dot_dimension_numbers<[1], [0], [0], [1], [0, 0, 1, 1], [], []>} : vector<4x8xf32>, vector<8x256xf32>, vector<4x256xf32> -> vector<4x256xf32>
    %62 = vector.broadcast %5 : vector<4x1xf32> to vector<4x256xf32>
    %63 = arith.addf %61, %62 : vector<4x256xf32>
    %64 = arith.addf %63, %36 : vector<4x256xf32>
    %c0_20 = arith.constant 0 : index
    %c0_21 = arith.constant 0 : index
    %c0_22 = arith.constant 0 : index
    %65 = vector.load %arg8[%c0_20, %c0_21, %c0_22] : memref<2x4x256xf32, #tpu.memory_space<vmem>>, vector<1x4x256xf32>
    %66 = vector.shape_cast %65 : vector<1x4x256xf32> to vector<4x256xf32>
    %67 = vector.shape_cast %64 : vector<4x256xf32> to vector<1x4x256xf32>
    tpu.vector_store %arg8[%c0_20, %c0_21, %c0_22], %67 {strides = array<i32>} : memref<2x4x256xf32, #tpu.memory_space<vmem>>, vector<1x4x256xf32>,
    %c1 = arith.constant 1 : index
    %c0_23 = arith.constant 0 : index
    %c0_24 = arith.constant 0 : index
    %68 = vector.load %arg1[%c1, %c0_23, %c0_24] : memref<2x4x256xf32, #tpu.memory_space<vmem>>, vector<1x4x256xf32>
    %69 = vector.shape_cast %68 : vector<1x4x256xf32> to vector<4x256xf32>
    %cst_25 = arith.constant dense<0.000000e+00> : vector<8x256xf32>
    %70 = tpu.matmul %0, %69, %cst_25 {dimension_numbers = #tpu.dot_dimension_numbers<[1], [0], [0], [1], [0, 0, 1, 1], [], []>} : vector<8x4xf32>, vector<4x256xf32>, vector<8x256xf32> -> vector<8x256xf32>
    %71 = vector.broadcast %3 : vector<8x1xf32> to vector<8x256xf32>
    %72 = arith.addf %70, %71 : vector<8x256xf32>
    %73 = tpu.concatenate %34, %72, %34 in 1 : vector<8x128xf32>, vector<8x256xf32>, vector<8x128xf32> -> vector<8x512xf32>
    %74 = vector.extract_strided_slice %73 {offsets = [0, 111], sizes = [8, 256], strides = [1, 1]} : vector<8x512xf32> to vector<8x256xf32>
    %75 = arith.select %26, %32, %74 : vector<8x256xi1>, vector<8x256xf32>
    %76 = vector.extract_strided_slice %73 {offsets = [0, 112], sizes = [8, 256], strides = [1, 1]} : vector<8x512xf32> to vector<8x256xf32>
    %77 = vector.extract_strided_slice %73 {offsets = [0, 113], sizes = [8, 256], strides = [1, 1]} : vector<8x512xf32> to vector<8x256xf32>
    %78 = arith.select %30, %32, %77 : vector<8x256xi1>, vector<8x256xf32>
    %79 = vector.extract_strided_slice %73 {offsets = [0, 127], sizes = [8, 256], strides = [1, 1]} : vector<8x512xf32> to vector<8x256xf32>
    %80 = arith.select %26, %32, %79 : vector<8x256xi1>, vector<8x256xf32>
    %81 = vector.extract_strided_slice %73 {offsets = [0, 128], sizes = [8, 256], strides = [1, 1]} : vector<8x512xf32> to vector<8x256xf32>
    %82 = vector.extract_strided_slice %73 {offsets = [0, 129], sizes = [8, 256], strides = [1, 1]} : vector<8x512xf32> to vector<8x256xf32>
    %83 = arith.select %30, %32, %82 : vector<8x256xi1>, vector<8x256xf32>
    %84 = vector.extract_strided_slice %73 {offsets = [0, 143], sizes = [8, 256], strides = [1, 1]} : vector<8x512xf32> to vector<8x256xf32>
    %85 = arith.select %26, %32, %84 : vector<8x256xi1>, vector<8x256xf32>
    %86 = vector.extract_strided_slice %73 {offsets = [0, 144], sizes = [8, 256], strides = [1, 1]} : vector<8x512xf32> to vector<8x256xf32>
    %87 = vector.extract_strided_slice %73 {offsets = [0, 145], sizes = [8, 256], strides = [1, 1]} : vector<8x512xf32> to vector<8x256xf32>
    %88 = arith.select %30, %32, %87 : vector<8x256xi1>, vector<8x256xf32>
    %89 = tpu.concatenate %75, %76, %78, %80, %81, %83, %85, %86, %88 in 0 : vector<8x256xf32>, vector<8x256xf32>, vector<8x256xf32>, vector<8x256xf32>, vector<8x256xf32>, vector<8x256xf32>, vector<8x256xf32>, vector<8x256xf32>, vector<8x256xf32> -> vector<72x256xf32>
    %cst_26 = arith.constant dense<0.000000e+00> : vector<8x256xf32>
    %90 = tpu.matmul %1, %89, %cst_26 {dimension_numbers = #tpu.dot_dimension_numbers<[1], [0], [0], [1], [0, 0, 1, 1], [], []>} : vector<8x72xf32>, vector<72x256xf32>, vector<8x256xf32> -> vector<8x256xf32>
    %91 = vector.broadcast %4 : vector<8x1xf32> to vector<8x256xf32>
    %92 = arith.addf %90, %91 : vector<8x256xf32>
    %93 = arith.addf %92, %72 : vector<8x256xf32>
    %cst_27 = arith.constant dense<0.000000e+00> : vector<4x256xf32>
    %94 = tpu.matmul %2, %93, %cst_27 {dimension_numbers = #tpu.dot_dimension_numbers<[1], [0], [0], [1], [0, 0, 1, 1], [], []>} : vector<4x8xf32>, vector<8x256xf32>, vector<4x256xf32> -> vector<4x256xf32>
    %95 = vector.broadcast %5 : vector<4x1xf32> to vector<4x256xf32>
    %96 = arith.addf %94, %95 : vector<4x256xf32>
    %97 = arith.addf %96, %69 : vector<4x256xf32>
    %c1_28 = arith.constant 1 : index
    %c0_29 = arith.constant 0 : index
    %c0_30 = arith.constant 0 : index
    %98 = vector.load %arg8[%c1_28, %c0_29, %c0_30] : memref<2x4x256xf32, #tpu.memory_space<vmem>>, vector<1x4x256xf32>
    %99 = vector.shape_cast %98 : vector<1x4x256xf32> to vector<4x256xf32>
    %100 = vector.shape_cast %97 : vector<4x256xf32> to vector<1x4x256xf32>
    tpu.vector_store %arg8[%c1_28, %c0_29, %c0_30], %100 {strides = array<i32>} : memref<2x4x256xf32, #tpu.memory_space<vmem>>, vector<1x4x256xf32>,
    return
  }
  func.func @transform_0(%arg0: i32) -> (i32, i32, i32) {
    %c0_i32 = arith.constant 0 : i32
    %c0_i32_0 = arith.constant 0 : i32
    %c0_i32_1 = arith.constant 0 : i32
    %c0_i32_2 = arith.constant 0 : i32
    return %c0_i32, %c0_i32_0, %c0_i32_1 : i32, i32, i32
  }
  func.func @transform_1(%arg0: i32) -> (i32, i32) {
    %c0_i32 = arith.constant 0 : i32
    %c0_i32_0 = arith.constant 0 : i32
    %c0_i32_1 = arith.constant 0 : i32
    return %c0_i32, %c0_i32_0 : i32, i32
  }
  func.func @transform_2(%arg0: i32) -> (i32, i32) {
    %c0_i32 = arith.constant 0 : i32
    %c0_i32_0 = arith.constant 0 : i32
    %c0_i32_1 = arith.constant 0 : i32
    return %c0_i32, %c0_i32_0 : i32, i32
  }
  func.func @transform_3(%arg0: i32) -> (i32, i32) {
    %c0_i32 = arith.constant 0 : i32
    %c0_i32_0 = arith.constant 0 : i32
    %c0_i32_1 = arith.constant 0 : i32
    return %c0_i32, %c0_i32_0 : i32, i32
  }
  func.func @transform_4(%arg0: i32) -> (i32, i32) {
    %c0_i32 = arith.constant 0 : i32
    %c0_i32_0 = arith.constant 0 : i32
    %c0_i32_1 = arith.constant 0 : i32
    return %c0_i32, %c0_i32_0 : i32, i32
  }
  func.func @transform_5(%arg0: i32) -> (i32, i32) {
    %c0_i32 = arith.constant 0 : i32
    %c0_i32_0 = arith.constant 0 : i32
    %c0_i32_1 = arith.constant 0 : i32
    return %c0_i32, %c0_i32_0 : i32, i32
  }
  func.func @transform_6(%arg0: i32) -> (i32, i32) {
    %c0_i32 = arith.constant 0 : i32
    %c0_i32_0 = arith.constant 0 : i32
    %c0_i32_1 = arith.constant 0 : i32
    return %c0_i32, %c0_i32_0 : i32, i32
  }
  func.func @transform_7(%arg0: i32) -> (i32, i32, i32) {
    %c0_i32 = arith.constant 0 : i32
    %c0_i32_0 = arith.constant 0 : i32
    %c0_i32_1 = arith.constant 0 : i32
    %c0_i32_2 = arith.constant 0 : i32
    return %c0_i32, %c0_i32_0, %c0_i32_1 : i32, i32, i32
  }
}

</mosaic_0001>

<llo_original>
// kernel: rrrb_pallas.1
$region0: #{rrrb_pallas.1}
  #allocation0 [shape = 'u32[]', space=smem, size = 0x4, offset = 0x4, fixed_abs, tag = 'smem constant byte address 0x4 - core index']
  #allocation1 [shape = 'u32[144,128]{1,0:T(1,128)}', space=vmem, size = 0x12000, scoped, tag = 'internal scratch']
  %s0 = inlined_call_operand.vmem [shape: f32[2,4,256], index: 0, kind: input, shape index: {}]
  %s1 = inlined_call_operand.vmem [shape: f32[8,4], index: 1, kind: input, shape index: {}]
  %s2 = inlined_call_operand.vmem [shape: f32[8,1], index: 2, kind: input, shape index: {}]
  %s3 = inlined_call_operand.vmem [shape: f32[8,72], index: 3, kind: input, shape index: {}]
  %s4 = inlined_call_operand.vmem [shape: f32[8,1], index: 4, kind: input, shape index: {}]
  %s5 = inlined_call_operand.vmem [shape: f32[4,8], index: 5, kind: input, shape index: {}]
  %s6 = inlined_call_operand.vmem [shape: f32[4,1], index: 6, kind: input, shape index: {}]
  %s7 = inlined_call_operand.vmem [shape: f32[2,4,256], index: 7, kind: output, shape index: {}]
  %s8 = sld [smem:[#allocation0]]
  $region38: #{rrrb_pallas.1} parent=0
    _
  %s10 = ssub.s32 1, %s8
  %s11 = scalar_select 0, %s10, %s8
  // Predicated region
  $region2: #{rrrb_pallas.1} parent=0 // pred_check
    _
  $region3: #{rrrb_pallas.1} parent=0 // pred_check_branch
    %13 = sbr.rel (0) target = $region5
  $region4: #{rrrb_pallas.1} parent=0 // pred_region
    _
  $region5: #{rrrb_pallas.1} parent=0 // pred_fallthru
    _
  // Predicated region
  $region6: #{rrrb_pallas.1} parent=0 // pred_check
    _
  $region7: #{rrrb_pallas.1} parent=0 // pred_check_branch
    %15 = sbr.rel (0) target = $region9
  $region8: #{rrrb_pallas.1} parent=0 // pred_region
    _
  $region9: #{rrrb_pallas.1} parent=0 // pred_fallthru
    _
  // Predicated region
  $region10: #{rrrb_pallas.1} parent=0 // pred_check
    _
  $region11: #{rrrb_pallas.1} parent=0 // pred_check_branch
    %17 = sbr.rel (0) target = $region13
  $region12: #{rrrb_pallas.1} parent=0 // pred_region
    _
  $region13: #{rrrb_pallas.1} parent=0 // pred_fallthru
    _
  // Predicated region
  $region14: #{rrrb_pallas.1} parent=0 // pred_check
    _
  $region15: #{rrrb_pallas.1} parent=0 // pred_check_branch
    %19 = sbr.rel (0) target = $region17
  $region16: #{rrrb_pallas.1} parent=0 // pred_region
    _
  $region17: #{rrrb_pallas.1} parent=0 // pred_fallthru
    _
  // Predicated region
  $region18: #{rrrb_pallas.1} parent=0 // pred_check
    _
  $region19: #{rrrb_pallas.1} parent=0 // pred_check_branch
    %21 = sbr.rel (0) target = $region21
  $region20: #{rrrb_pallas.1} parent=0 // pred_region
    _
  $region21: #{rrrb_pallas.1} parent=0 // pred_fallthru
    _
  // Predicated region
  $region22: #{rrrb_pallas.1} parent=0 // pred_check
    _
  $region23: #{rrrb_pallas.1} parent=0 // pred_check_branch
    %23 = sbr.rel (0) target = $region25
  $region24: #{rrrb_pallas.1} parent=0 // pred_region
    _
  $region25: #{rrrb_pallas.1} parent=0 // pred_fallthru
    _
  // Predicated region
  $region26: #{rrrb_pallas.1} parent=0 // pred_check
    _
  $region27: #{rrrb_pallas.1} parent=0 // pred_check_branch
    %25 = sbr.rel (0) target = $region29
  $region28: #{rrrb_pallas.1} parent=0 // pred_region
    _
  $region29: #{rrrb_pallas.1} parent=0 // pred_fallthru
    _
  %v26 = vld [vmem:[%s1] sm:$0xff]
  %v27 = vld [vmem:[%s3] sm:$0xff]
  %v28 = vld [vmem:[%s5] sm:$0xf]
  %v29 = vld [vmem:[%s2] sm:$0xff]
  %v30 = vld [vmem:[%s4] sm:$0xff]
  %v31 = vld [vmem:[%s6] sm:$0xf]
  %v32 = vlaneseq
  %v33 = vand.u32 %v32, 127
  %v34 = vadd.s32 %v33, 128
  %vm35 = vcmp.lt.s32.totalorder %v33, 0
  %v36 = vsub.s32 0, %v33
  %v37 = vsel %vm35, %v36, %v33
  %v38 = vshrl.u32 %v37, 4
  %v39 = vand.u32 %v37, 15
  %v40 = vsub.s32 0, %v39
  %v41 = vsel %vm35, %v40, %v39
  %vm42 = vcmp.lt.s32.totalorder %v34, 0
  %v43 = vsub.s32 0, %v34
  %v44 = vsel %vm42, %v43, %v34
  %v45 = vshrl.u32 %v44, 4
  %v46 = vand.u32 %v44, 15
  %v47 = vsub.s32 0, %v46
  %v48 = vsel %vm42, %v47, %v46
  %vm49 = vcmp.ne.s32.totalorder %v41, 0
  %vm50 = vcmp.ne.s32.totalorder %v48, 0
  %vm51 = vcmp.lt.s32.totalorder %v41, 0
  %vm52 = vcmp.lt.s32.totalorder %v48, 0
  %vm53 = vmand %vm51, %vm49
  %vm54 = vmand %vm52, %vm50
  %v55 = vadd.s32 %v41, 16
  %v56 = vadd.s32 %v48, 16
  %v57 = vsel %vm53, %v55, %v41
  %v58 = vsel %vm54, %v56, %v48
  %vm59 = vcmp.eq.s32.totalorder %v57, 0
  %vm60 = vcmp.eq.s32.totalorder %v58, 0
  %v61 = vsel %vm59, 1, 0
  %v62 = vsel %vm60, 1, 0
  %vm63 = vcmp.eq.s32.totalorder %v61, 1
  %vm64 = vcmp.eq.s32.totalorder %v62, 1
  %vm65 = vcmp.eq.s32.totalorder %v57, 15
  %vm66 = vcmp.eq.s32.totalorder %v58, 15
  %v67 = vsel %vm65, 1, 0
  %v68 = vsel %vm66, 1, 0
  %vm69 = vcmp.eq.s32.totalorder %v67, 1
  %vm70 = vcmp.eq.s32.totalorder %v68, 1
  %72 = vset.pattern.permute.xlu0 0
  %73 = vperm.xlu0 %72, %v29
  %v74 = vpop.permute.xlu0 %73
  %v76 = vld [vmem:[%s0] sm:$0xff]
  %v78 = vcombine.high %v76, %v76
  %vm79 = vcmask 31744
  %v81 = vsel %vm79, %v26, 0
  %vm83 = vcmask 1043456
  %v84 = vsel %vm83, %v76, 0
  %v86 = vsel %vm83, %v78, 0
  %88 = vmatprep.subr.mxu0 0.0
  %89 = vmatpush1.msra.mxu0 0.0
  %90 = vmatprep.subr.mxu0 0.0
  %91 = vmatpush1.msra.mxu0 0.0
  %92 = vmatprep.subr.mxu0 0.0
  %93 = vmatpush1.msra.mxu0 0.0
  %94 = vmatprep.subr.mxu0 0.0
  %95 = vmatpush1.msra.mxu0 0.0
  %96 = vmatprep.subr.mxu0 0.0
  %97 = vmatpush1.msra.mxu0 0.0
  %98 = vmatprep.subr.mxu0 0.0
  %99 = vmatpush1.msra.mxu0 0.0
  %100 = vmatprep.subr.mxu0 0.0
  %101 = vmatpush1.msra.mxu0 0.0
  %102 = vmatprep.subr.mxu0 0.0
  %103 = vmatpush1.msra.mxu0 0.0
  %104 = vmatprep.subr.mxu0 0.0
  %105 = vmatpush1.msra.mxu0 0.0
  %106 = vmatprep.subr.mxu0 0.0
  %107 = vmatpush1.msra.mxu0 0.0
  %108 = vmatprep.subr.mxu0 0.0
  %109 = vmatpush1.msra.mxu0 0.0
  %110 = vmatprep.subr.mxu0 0.0
  %111 = vmatpush1.msra.mxu0 0.0
  %112 = vmatprep.subr.mxu0 0.0
  %113 = vmatpush1.msra.mxu0 0.0
  %114 = vmatprep.subr.mxu0 0.0
  %115 = vmatpush1.msra.mxu0 0.0
  %116 = vmatprep.subr.mxu0 0.0
  %117 = vmatpush1.msra.mxu0 0.0
  %118 = vmatprep.subr.mxu0 %v86
  %119 = vmatpush1.msra.mxu0 %v84
  %120 = vmatprep.subr.mxu0 0.0
  %121 = vmatpush2.msra.mxu0 0.0
  %122 = vmatprep.subr.mxu0 0.0
  %123 = vmatpush2.msra.mxu0 0.0
  %124 = vmatprep.subr.mxu0 0.0
  %125 = vmatpush2.msra.mxu0 0.0
  %126 = vmatprep.subr.mxu0 0.0
  %127 = vmatpush2.msra.mxu0 0.0
  %128 = vmatprep.subr.mxu0 0.0
  %129 = vmatpush2.msra.mxu0 0.0
  %130 = vmatprep.subr.mxu0 0.0
  %131 = vmatpush2.msra.mxu0 0.0
  %132 = vmatprep.subr.mxu0 0.0
  %133 = vmatpush2.msra.mxu0 0.0
  %134 = vmatprep.subr.mxu0 0.0
  %135 = vmatpush2.msra.mxu0 0.0
  %136 = vmatprep.subr.mxu0 0.0
  %137 = vmatpush2.msra.mxu0 0.0
  %138 = vmatprep.subr.mxu0 0.0
  %139 = vmatpush2.msra.mxu0 0.0
  %140 = vmatprep.subr.mxu0 0.0
  %141 = vmatpush2.msra.mxu0 0.0
  %142 = vmatprep.subr.mxu0 0.0
  %143 = vmatpush2.msra.mxu0 0.0
  %144 = vmatprep.subr.mxu0 0.0
  %145 = vmatpush2.msra.mxu0 0.0
  %146 = vmatprep.subr.mxu0 0.0
  %147 = vmatpush2.msra.mxu0 0.0
  %148 = vmatprep.subr.mxu0 0.0
  %149 = vmatpush2.msra.mxu0 0.0
  %150 = vmatprep.subr.mxu0 0.0
  %151 = vmatpush2.msra.mxu0 0.0
  %152 = vmatprep.mubr.f32.mxu0 0.0
  %153 = vmatmul.mubr.f32.gmra.mxu0 %v81
  %v154 = vpop.f32.mrf.mxu0
  %v155 = vadd.f32 %v74, %v154
  %v156 = vpop.f32.mrf.mxu0
  %v157 = vadd.f32 %v74, %v156
  %158 = vdwg.mxu0
  %161 = vrot.lane.b32.xlu0 %v74, 17
  %v162 = vpop.permute.xlu0 %161
  %163 = vrot.lane.b32.xlu0 %v155, 17
  %v164 = vpop.permute.xlu0 %163
  %165 = vrot.lane.b32.xlu0 %v157, 17
  %v166 = vpop.permute.xlu0 %165
  %vm167 = vcmask 138240
  %v168 = vsel %vm167, %v162, %v164
  %v169 = vsel %vm167, %v164, %v166
  %v172 = vsel %vm63, %v74, %v168
  %v173 = vsel %vm64, %v74, %v169
  %174 = vrot.lane.b32.xlu0 %v74, 15
  %v175 = vpop.permute.xlu0 %174
  %176 = vrot.lane.b32.xlu0 %v155, 15
  %v177 = vpop.permute.xlu0 %176
  %178 = vrot.lane.b32.xlu0 %v157, 15
  %v179 = vpop.permute.xlu0 %178
  %vm180 = vcmask 121856
  %v181 = vsel %vm180, %v175, %v177
  %v182 = vsel %vm180, %v177, %v179
  %v185 = vsel %vm69, %v74, %v181
  %v186 = vsel %vm70, %v74, %v182
  %187 = vrot.lane.b32.xlu0 %v74, 1
  %v188 = vpop.permute.xlu0 %187
  %189 = vrot.lane.b32.xlu0 %v155, 1
  %v190 = vpop.permute.xlu0 %189
  %191 = vrot.lane.b32.xlu0 %v157, 1
  %v192 = vpop.permute.xlu0 %191
  %vm193 = vcmask 7168
  %v194 = vsel %vm193, %v188, %v190
  %v195 = vsel %vm193, %v190, %v192
  %v198 = vsel %vm63, %v74, %v194
  %v199 = vsel %vm64, %v74, %v195
  %200 = vrot.lane.b32.xlu0 %v155, 127
  %v201 = vpop.permute.xlu0 %200
  %202 = vrot.lane.b32.xlu0 %v157, 127
  %v203 = vpop.permute.xlu0 %202
  %204 = vrot.lane.b32.xlu0 %v74, 127
  %v205 = vpop.permute.xlu0 %204
  %vm206 = vcmask 1039360
  %v207 = vsel %vm206, %v201, %v203
  %v208 = vsel %vm206, %v203, %v205
  %v211 = vsel %vm69, %v74, %v207
  %v212 = vsel %vm70, %v74, %v208
  %213 = vrot.lane.b32.xlu0 %v155, 113
  %v214 = vpop.permute.xlu0 %213
  %215 = vrot.lane.b32.xlu0 %v157, 113
  %v216 = vpop.permute.xlu0 %215
  %217 = vrot.lane.b32.xlu0 %v74, 113
  %v218 = vpop.permute.xlu0 %217
  %vm219 = vcmask 924672
  %v220 = vsel %vm219, %v214, %v216
  %v221 = vsel %vm219, %v216, %v218
  %v224 = vsel %vm63, %v74, %v220
  %v225 = vsel %vm64, %v74, %v221
  %226 = vrot.lane.b32.xlu0 %v155, 111
  %v227 = vpop.permute.xlu0 %226
  %228 = vrot.lane.b32.xlu0 %v157, 111
  %v229 = vpop.permute.xlu0 %228
  %230 = vrot.lane.b32.xlu0 %v74, 111
  %v231 = vpop.permute.xlu0 %230
  %vm232 = vcmask 908288
  %v233 = vsel %vm232, %v227, %v229
  %v234 = vsel %vm232, %v229, %v231
  %v237 = vsel %vm69, %v74, %v233
  %v238 = vsel %vm70, %v74, %v234
  %239 = vrot.lane.b32.xlu0 %v74, 16
  %v240 = vpop.permute.xlu0 %239
  %241 = vrot.lane.b32.xlu0 %v155, 16
  %v242 = vpop.permute.xlu0 %241
  %243 = vrot.lane.b32.xlu0 %v157, 16
  %v244 = vpop.permute.xlu0 %243
  %vm245 = vcmask 130048
  %v246 = vsel %vm245, %v240, %v242
  %v247 = vsel %vm245, %v242, %v244
  %250 = vrot.lane.b32.xlu0 %v155, 112
  %v251 = vpop.permute.xlu0 %250
  %252 = vrot.lane.b32.xlu0 %v157, 112
  %v253 = vpop.permute.xlu0 %252
  %254 = vrot.lane.b32.xlu0 %v74, 112
  %v255 = vpop.permute.xlu0 %254
  %vm256 = vcmask 916480
  %v257 = vsel %vm256, %v251, %v253
  %v258 = vsel %vm256, %v253, %v255
  %262 = vset.pattern.permute.xlu0 0
  %263 = vperm.xlu0 %262, %v30
  %v264 = vpop.permute.xlu0 %263
  %vm266 = vcmask 588800
  %v268 = vsel %vm266, %v27, 0
  %270 = vmatprep.subr.mxu0 0.0
  %271 = vmatpush1.msra.mxu0 0.0
  %272 = vmatprep.subr.mxu0 0.0
  %273 = vmatpush1.msra.mxu0 0.0
  %274 = vmatprep.subr.mxu0 0.0
  %275 = vmatpush1.msra.mxu0 0.0
  %276 = vmatprep.subr.mxu0 0.0
  %277 = vmatpush1.msra.mxu0 0.0
  %278 = vmatprep.subr.mxu0 0.0
  %279 = vmatpush1.msra.mxu0 0.0
  %280 = vmatprep.subr.mxu0 0.0
  %281 = vmatpush1.msra.mxu0 0.0
  %282 = vmatprep.subr.mxu0 0.0
  %283 = vmatpush1.msra.mxu0 0.0
  %284 = vmatprep.subr.mxu0 %v238
  %285 = vmatpush1.msra.mxu0 %v237
  %286 = vmatprep.subr.mxu0 %v258
  %287 = vmatpush1.msra.mxu0 %v257
  %288 = vmatprep.subr.mxu0 %v225
  %289 = vmatpush1.msra.mxu0 %v224
  %290 = vmatprep.subr.mxu0 %v212
  %291 = vmatpush1.msra.mxu0 %v211
  %292 = vmatprep.subr.mxu0 %v157
  %293 = vmatpush1.msra.mxu0 %v155
  %294 = vmatprep.subr.mxu0 %v199
  %295 = vmatpush1.msra.mxu0 %v198
  %296 = vmatprep.subr.mxu0 %v186
  %297 = vmatpush1.msra.mxu0 %v185
  %298 = vmatprep.subr.mxu0 %v247
  %299 = vmatpush1.msra.mxu0 %v246
  %300 = vmatprep.subr.mxu0 %v173
  %301 = vmatpush1.msra.mxu0 %v172
  %302 = vmatprep.subr.mxu0 0.0
  %303 = vmatpush2.msra.mxu0 0.0
  %304 = vmatprep.subr.mxu0 0.0
  %305 = vmatpush2.msra.mxu0 0.0
  %306 = vmatprep.subr.mxu0 0.0
  %307 = vmatpush2.msra.mxu0 0.0
  %308 = vmatprep.subr.mxu0 0.0
  %309 = vmatpush2.msra.mxu0 0.0
  %310 = vmatprep.subr.mxu0 0.0
  %311 = vmatpush2.msra.mxu0 0.0
  %312 = vmatprep.subr.mxu0 0.0
  %313 = vmatpush2.msra.mxu0 0.0
  %314 = vmatprep.subr.mxu0 0.0
  %315 = vmatpush2.msra.mxu0 0.0
  %316 = vmatprep.subr.mxu0 0.0
  %317 = vmatpush2.msra.mxu0 0.0
  %318 = vmatprep.subr.mxu0 0.0
  %319 = vmatpush2.msra.mxu0 0.0
  %320 = vmatprep.subr.mxu0 0.0
  %321 = vmatpush2.msra.mxu0 0.0
  %322 = vmatprep.subr.mxu0 0.0
  %323 = vmatpush2.msra.mxu0 0.0
  %324 = vmatprep.subr.mxu0 0.0
  %325 = vmatpush2.msra.mxu0 0.0
  %326 = vmatprep.subr.mxu0 0.0
  %327 = vmatpush2.msra.mxu0 0.0
  %328 = vmatprep.subr.mxu0 0.0
  %329 = vmatpush2.msra.mxu0 0.0
  %330 = vmatprep.subr.mxu0 0.0
  %331 = vmatpush2.msra.mxu0 0.0
  %332 = vmatprep.subr.mxu0 0.0
  %333 = vmatpush2.msra.mxu0 0.0
  %334 = vmatprep.mubr.f32.mxu0 0.0
  %335 = vmatmul.mubr.f32.gmra.mxu0 %v268
  %v336 = vpop.f32.mrf.mxu0
  %v337 = vadd.f32 %v264, %v336
  %v338 = vpop.f32.mrf.mxu0
  %v339 = vadd.f32 %v264, %v338
  %340 = vdwg.mxu0
  %v341 = vadd.f32 %v337, %v155
  %v342 = vadd.f32 %v339, %v157
  %344 = vset.pattern.permute.xlu0 0
  %345 = vperm.xlu0 %344, %v31
  %v346 = vpop.permute.xlu0 %345
  %vm348 = vcmask 64512
  %v350 = vsel %vm348, %v28, 0
  %352 = vmatprep.subr.mxu0 0.0
  %353 = vmatpush1.msra.mxu0 0.0
  %354 = vmatprep.subr.mxu0 0.0
  %355 = vmatpush1.msra.mxu0 0.0
  %356 = vmatprep.subr.mxu0 0.0
  %357 = vmatpush1.msra.mxu0 0.0
  %358 = vmatprep.subr.mxu0 0.0
  %359 = vmatpush1.msra.mxu0 0.0
  %360 = vmatprep.subr.mxu0 0.0
  %361 = vmatpush1.msra.mxu0 0.0
  %362 = vmatprep.subr.mxu0 0.0
  %363 = vmatpush1.msra.mxu0 0.0
  %364 = vmatprep.subr.mxu0 0.0
  %365 = vmatpush1.msra.mxu0 0.0
  %366 = vmatprep.subr.mxu0 0.0
  %367 = vmatpush1.msra.mxu0 0.0
  %368 = vmatprep.subr.mxu0 0.0
  %369 = vmatpush1.msra.mxu0 0.0
  %370 = vmatprep.subr.mxu0 0.0
  %371 = vmatpush1.msra.mxu0 0.0
  %372 = vmatprep.subr.mxu0 0.0
  %373 = vmatpush1.msra.mxu0 0.0
  %374 = vmatprep.subr.mxu0 0.0
  %375 = vmatpush1.msra.mxu0 0.0
  %376 = vmatprep.subr.mxu0 0.0
  %377 = vmatpush1.msra.mxu0 0.0
  %378 = vmatprep.subr.mxu0 0.0
  %379 = vmatpush1.msra.mxu0 0.0
  %380 = vmatprep.subr.mxu0 0.0
  %381 = vmatpush1.msra.mxu0 0.0
  %382 = vmatprep.subr.mxu0 %v342
  %383 = vmatpush1.msra.mxu0 %v341
  %384 = vmatprep.subr.mxu0 0.0
  %385 = vmatpush2.msra.mxu0 0.0
  %386 = vmatprep.subr.mxu0 0.0
  %387 = vmatpush2.msra.mxu0 0.0
  %388 = vmatprep.subr.mxu0 0.0
  %389 = vmatpush2.msra.mxu0 0.0
  %390 = vmatprep.subr.mxu0 0.0
  %391 = vmatpush2.msra.mxu0 0.0
  %392 = vmatprep.subr.mxu0 0.0
  %393 = vmatpush2.msra.mxu0 0.0
  %394 = vmatprep.subr.mxu0 0.0
  %395 = vmatpush2.msra.mxu0 0.0
  %396 = vmatprep.subr.mxu0 0.0
  %397 = vmatpush2.msra.mxu0 0.0
  %398 = vmatprep.subr.mxu0 0.0
  %399 = vmatpush2.msra.mxu0 0.0
  %400 = vmatprep.subr.mxu0 0.0
  %401 = vmatpush2.msra.mxu0 0.0
  %402 = vmatprep.subr.mxu0 0.0
  %403 = vmatpush2.msra.mxu0 0.0
  %404 = vmatprep.subr.mxu0 0.0
  %405 = vmatpush2.msra.mxu0 0.0
  %406 = vmatprep.subr.mxu0 0.0
  %407 = vmatpush2.msra.mxu0 0.0
  %408 = vmatprep.subr.mxu0 0.0
  %409 = vmatpush2.msra.mxu0 0.0
  %410 = vmatprep.subr.mxu0 0.0
  %411 = vmatpush2.msra.mxu0 0.0
  %412 = vmatprep.subr.mxu0 0.0
  %413 = vmatpush2.msra.mxu0 0.0
  %414 = vmatprep.subr.mxu0 0.0
  %415 = vmatpush2.msra.mxu0 0.0
  %416 = vmatprep.mubr.f32.mxu0 0.0
  %417 = vmatmul.mubr.f32.gmra.mxu0 %v350
  %v418 = vpop.f32.mrf.mxu0
  %v419 = vadd.f32 %v346, %v418
  %v420 = vpop.f32.mrf.mxu0
  %v421 = vadd.f32 %v346, %v420
  %422 = vdwg.mxu0
  %v424 = vadd.f32 %v419, %v76
  %v425 = vadd.f32 %v421, %v78
  %v428 = vcombine.low %v424, %v425
  %430 = vst [vmem:[%s7] sm:$0xff] %v428
  %s431 = scalar_lea.vmem %s0, 8
  %v432 = vld [vmem:[%s431] sm:$0xff]
  %v434 = vcombine.high %v432, %v432
  %v435 = vsel %vm83, %v432, 0
  %v437 = vsel %vm83, %v434, 0
  %439 = vmatprep.subr.mxu0 0.0
  %440 = vmatpush1.msra.mxu0 0.0
  %441 = vmatprep.subr.mxu0 0.0
  %442 = vmatpush1.msra.mxu0 0.0
  %443 = vmatprep.subr.mxu0 0.0
  %444 = vmatpush1.msra.mxu0 0.0
  %445 = vmatprep.subr.mxu0 0.0
  %446 = vmatpush1.msra.mxu0 0.0
  %447 = vmatprep.subr.mxu0 0.0
  %448 = vmatpush1.msra.mxu0 0.0
  %449 = vmatprep.subr.mxu0 0.0
  %450 = vmatpush1.msra.mxu0 0.0
  %451 = vmatprep.subr.mxu0 0.0
  %452 = vmatpush1.msra.mxu0 0.0
  %453 = vmatprep.subr.mxu0 0.0
  %454 = vmatpush1.msra.mxu0 0.0
  %455 = vmatprep.subr.mxu0 0.0
  %456 = vmatpush1.msra.mxu0 0.0
  %457 = vmatprep.subr.mxu0 0.0
  %458 = vmatpush1.msra.mxu0 0.0
  %459 = vmatprep.subr.mxu0 0.0
  %460 = vmatpush1.msra.mxu0 0.0
  %461 = vmatprep.subr.mxu0 0.0
  %462 = vmatpush1.msra.mxu0 0.0
  %463 = vmatprep.subr.mxu0 0.0
  %464 = vmatpush1.msra.mxu0 0.0
  %465 = vmatprep.subr.mxu0 0.0
  %466 = vmatpush1.msra.mxu0 0.0
  %467 = vmatprep.subr.mxu0 0.0
  %468 = vmatpush1.msra.mxu0 0.0
  %469 = vmatprep.subr.mxu0 %v437
  %470 = vmatpush1.msra.mxu0 %v435
  %471 = vmatprep.subr.mxu0 0.0
  %472 = vmatpush2.msra.mxu0 0.0
  %473 = vmatprep.subr.mxu0 0.0
  %474 = vmatpush2.msra.mxu0 0.0
  %475 = vmatprep.subr.mxu0 0.0
  %476 = vmatpush2.msra.mxu0 0.0
  %477 = vmatprep.subr.mxu0 0.0
  %478 = vmatpush2.msra.mxu0 0.0
  %479 = vmatprep.subr.mxu0 0.0
  %480 = vmatpush2.msra.mxu0 0.0
  %481 = vmatprep.subr.mxu0 0.0
  %482 = vmatpush2.msra.mxu0 0.0
  %483 = vmatprep.subr.mxu0 0.0
  %484 = vmatpush2.msra.mxu0 0.0
  %485 = vmatprep.subr.mxu0 0.0
  %486 = vmatpush2.msra.mxu0 0.0
  %487 = vmatprep.subr.mxu0 0.0
  %488 = vmatpush2.msra.mxu0 0.0
  %489 = vmatprep.subr.mxu0 0.0
  %490 = vmatpush2.msra.mxu0 0.0
  %491 = vmatprep.subr.mxu0 0.0
  %492 = vmatpush2.msra.mxu0 0.0
  %493 = vmatprep.subr.mxu0 0.0
  %494 = vmatpush2.msra.mxu0 0.0
  %495 = vmatprep.subr.mxu0 0.0
  %496 = vmatpush2.msra.mxu0 0.0
  %497 = vmatprep.subr.mxu0 0.0
  %498 = vmatpush2.msra.mxu0 0.0
  %499 = vmatprep.subr.mxu0 0.0
  %500 = vmatpush2.msra.mxu0 0.0
  %501 = vmatprep.subr.mxu0 0.0
  %502 = vmatpush2.msra.mxu0 0.0
  %503 = vmatprep.mubr.f32.mxu0 0.0
  %504 = vmatmul.mubr.f32.gmra.mxu0 %v81
  %v505 = vpop.f32.mrf.mxu0
  %v506 = vadd.f32 %v74, %v505
  %v507 = vpop.f32.mrf.mxu0
  %v508 = vadd.f32 %v74, %v507
  %509 = vdwg.mxu0
  %512 = vrot.lane.b32.xlu0 %v506, 17
  %v513 = vpop.permute.xlu0 %512
  %514 = vrot.lane.b32.xlu0 %v508, 17
  %v515 = vpop.permute.xlu0 %514
  %v516 = vsel %vm167, %v162, %v513
  %v517 = vsel %vm167, %v513, %v515
  %v520 = vsel %vm63, %v74, %v516
  %v521 = vsel %vm64, %v74, %v517
  %522 = vrot.lane.b32.xlu0 %v506, 15
  %v523 = vpop.permute.xlu0 %522
  %524 = vrot.lane.b32.xlu0 %v508, 15
  %v525 = vpop.permute.xlu0 %524
  %v526 = vsel %vm180, %v175, %v523
  %v527 = vsel %vm180, %v523, %v525
  %v530 = vsel %vm69, %v74, %v526
  %v531 = vsel %vm70, %v74, %v527
  %532 = vrot.lane.b32.xlu0 %v506, 1
  %v533 = vpop.permute.xlu0 %532
  %534 = vrot.lane.b32.xlu0 %v508, 1
  %v535 = vpop.permute.xlu0 %534
  %v536 = vsel %vm193, %v188, %v533
  %v537 = vsel %vm193, %v533, %v535
  %v540 = vsel %vm63, %v74, %v536
  %v541 = vsel %vm64, %v74, %v537
  %542 = vrot.lane.b32.xlu0 %v506, 127
  %v543 = vpop.permute.xlu0 %542
  %544 = vrot.lane.b32.xlu0 %v508, 127
  %v545 = vpop.permute.xlu0 %544
  %v546 = vsel %vm206, %v543, %v545
  %v547 = vsel %vm206, %v545, %v205
  %v550 = vsel %vm69, %v74, %v546
  %v551 = vsel %vm70, %v74, %v547
  %552 = vrot.lane.b32.xlu0 %v506, 113
  %v553 = vpop.permute.xlu0 %552
  %554 = vrot.lane.b32.xlu0 %v508, 113
  %v555 = vpop.permute.xlu0 %554
  %v556 = vsel %vm219, %v553, %v555
  %v557 = vsel %vm219, %v555, %v218
  %v560 = vsel %vm63, %v74, %v556
  %v561 = vsel %vm64, %v74, %v557
  %562 = vrot.lane.b32.xlu0 %v506, 111
  %v563 = vpop.permute.xlu0 %562
  %564 = vrot.lane.b32.xlu0 %v508, 111
  %v565 = vpop.permute.xlu0 %564
  %v566 = vsel %vm232, %v563, %v565
  %v567 = vsel %vm232, %v565, %v231
  %v570 = vsel %vm69, %v74, %v566
  %v571 = vsel %vm70, %v74, %v567
  %572 = vrot.lane.b32.xlu0 %v506, 16
  %v573 = vpop.permute.xlu0 %572
  %574 = vrot.lane.b32.xlu0 %v508, 16
  %v575 = vpop.permute.xlu0 %574
  %v576 = vsel %vm245, %v240, %v573
  %v577 = vsel %vm245, %v573, %v575
  %580 = vrot.lane.b32.xlu0 %v506, 112
  %v581 = vpop.permute.xlu0 %580
  %582 = vrot.lane.b32.xlu0 %v508, 112
  %v583 = vpop.permute.xlu0 %582
  %v584 = vsel %vm256, %v581, %v583
  %v585 = vsel %vm256, %v583, %v255
  %588 = vmatprep.subr.mxu0 0.0
  %589 = vmatpush1.msra.mxu0 0.0
  %590 = vmatprep.subr.mxu0 0.0
  %591 = vmatpush1.msra.mxu0 0.0
  %592 = vmatprep.subr.mxu0 0.0
  %593 = vmatpush1.msra.mxu0 0.0
  %594 = vmatprep.subr.mxu0 0.0
  %595 = vmatpush1.msra.mxu0 0.0
  %596 = vmatprep.subr.mxu0 0.0
  %597 = vmatpush1.msra.mxu0 0.0
  %598 = vmatprep.subr.mxu0 0.0
  %599 = vmatpush1.msra.mxu0 0.0
  %600 = vmatprep.subr.mxu0 0.0
  %601 = vmatpush1.msra.mxu0 0.0
  %602 = vmatprep.subr.mxu0 %v571
  %603 = vmatpush1.msra.mxu0 %v570
  %604 = vmatprep.subr.mxu0 %v585
  %605 = vmatpush1.msra.mxu0 %v584
  %606 = vmatprep.subr.mxu0 %v561
  %607 = vmatpush1.msra.mxu0 %v560
  %608 = vmatprep.subr.mxu0 %v551
  %609 = vmatpush1.msra.mxu0 %v550
  %610 = vmatprep.subr.mxu0 %v508
  %611 = vmatpush1.msra.mxu0 %v506
  %612 = vmatprep.subr.mxu0 %v541
  %613 = vmatpush1.msra.mxu0 %v540
  %614 = vmatprep.subr.mxu0 %v531
  %615 = vmatpush1.msra.mxu0 %v530
  %616 = vmatprep.subr.mxu0 %v577
  %617 = vmatpush1.msra.mxu0 %v576
  %618 = vmatprep.subr.mxu0 %v521
  %619 = vmatpush1.msra.mxu0 %v520
  %620 = vmatprep.subr.mxu0 0.0
  %621 = vmatpush2.msra.mxu0 0.0
  %622 = vmatprep.subr.mxu0 0.0
  %623 = vmatpush2.msra.mxu0 0.0
  %624 = vmatprep.subr.mxu0 0.0
  %625 = vmatpush2.msra.mxu0 0.0
  %626 = vmatprep.subr.mxu0 0.0
  %627 = vmatpush2.msra.mxu0 0.0
  %628 = vmatprep.subr.mxu0 0.0
  %629 = vmatpush2.msra.mxu0 0.0
  %630 = vmatprep.subr.mxu0 0.0
  %631 = vmatpush2.msra.mxu0 0.0
  %632 = vmatprep.subr.mxu0 0.0
  %633 = vmatpush2.msra.mxu0 0.0
  %634 = vmatprep.subr.mxu0 0.0
  %635 = vmatpush2.msra.mxu0 0.0
  %636 = vmatprep.subr.mxu0 0.0
  %637 = vmatpush2.msra.mxu0 0.0
  %638 = vmatprep.subr.mxu0 0.0
  %639 = vmatpush2.msra.mxu0 0.0
  %640 = vmatprep.subr.mxu0 0.0
  %641 = vmatpush2.msra.mxu0 0.0
  %642 = vmatprep.subr.mxu0 0.0
  %643 = vmatpush2.msra.mxu0 0.0
  %644 = vmatprep.subr.mxu0 0.0
  %645 = vmatpush2.msra.mxu0 0.0
  %646 = vmatprep.subr.mxu0 0.0
  %647 = vmatpush2.msra.mxu0 0.0
  %648 = vmatprep.subr.mxu0 0.0
  %649 = vmatpush2.msra.mxu0 0.0
  %650 = vmatprep.subr.mxu0 0.0
  %651 = vmatpush2.msra.mxu0 0.0
  %652 = vmatprep.mubr.f32.mxu0 0.0
  %653 = vmatmul.mubr.f32.gmra.mxu0 %v268
  %v654 = vpop.f32.mrf.mxu0
  %v655 = vadd.f32 %v264, %v654
  %v656 = vpop.f32.mrf.mxu0
  %v657 = vadd.f32 %v264, %v656
  %658 = vdwg.mxu0
  %v659 = vadd.f32 %v655, %v506
  %v660 = vadd.f32 %v657, %v508
  %661 = vmatprep.subr.mxu0 0.0
  %662 = vmatpush1.msra.mxu0 0.0
  %663 = vmatprep.subr.mxu0 0.0
  %664 = vmatpush1.msra.mxu0 0.0
  %665 = vmatprep.subr.mxu0 0.0
  %666 = vmatpush1.msra.mxu0 0.0
  %667 = vmatprep.subr.mxu0 0.0
  %668 = vmatpush1.msra.mxu0 0.0
  %669 = vmatprep.subr.mxu0 0.0
  %670 = vmatpush1.msra.mxu0 0.0
  %671 = vmatprep.subr.mxu0 0.0
  %672 = vmatpush1.msra.mxu0 0.0
  %673 = vmatprep.subr.mxu0 0.0
  %674 = vmatpush1.msra.mxu0 0.0
  %675 = vmatprep.subr.mxu0 0.0
  %676 = vmatpush1.msra.mxu0 0.0
  %677 = vmatprep.subr.mxu0 0.0
  %678 = vmatpush1.msra.mxu0 0.0
  %679 = vmatprep.subr.mxu0 0.0
  %680 = vmatpush1.msra.mxu0 0.0
  %681 = vmatprep.subr.mxu0 0.0
  %682 = vmatpush1.msra.mxu0 0.0
  %683 = vmatprep.subr.mxu0 0.0
  %684 = vmatpush1.msra.mxu0 0.0
  %685 = vmatprep.subr.mxu0 0.0
  %686 = vmatpush1.msra.mxu0 0.0
  %687 = vmatprep.subr.mxu0 0.0
  %688 = vmatpush1.msra.mxu0 0.0
  %689 = vmatprep.subr.mxu0 0.0
  %690 = vmatpush1.msra.mxu0 0.0
  %691 = vmatprep.subr.mxu0 %v660
  %692 = vmatpush1.msra.mxu0 %v659
  %693 = vmatprep.subr.mxu0 0.0
  %694 = vmatpush2.msra.mxu0 0.0
  %695 = vmatprep.subr.mxu0 0.0
  %696 = vmatpush2.msra.mxu0 0.0
  %697 = vmatprep.subr.mxu0 0.0
  %698 = vmatpush2.msra.mxu0 0.0
  %699 = vmatprep.subr.mxu0 0.0
  %700 = vmatpush2.msra.mxu0 0.0
  %701 = vmatprep.subr.mxu0 0.0
  %702 = vmatpush2.msra.mxu0 0.0
  %703 = vmatprep.subr.mxu0 0.0
  %704 = vmatpush2.msra.mxu0 0.0
  %705 = vmatprep.subr.mxu0 0.0
  %706 = vmatpush2.msra.mxu0 0.0
  %707 = vmatprep.subr.mxu0 0.0
  %708 = vmatpush2.msra.mxu0 0.0
  %709 = vmatprep.subr.mxu0 0.0
  %710 = vmatpush2.msra.mxu0 0.0
  %711 = vmatprep.subr.mxu0 0.0
  %712 = vmatpush2.msra.mxu0 0.0
  %713 = vmatprep.subr.mxu0 0.0
  %714 = vmatpush2.msra.mxu0 0.0
  %715 = vmatprep.subr.mxu0 0.0
  %716 = vmatpush2.msra.mxu0 0.0
  %717 = vmatprep.subr.mxu0 0.0
  %718 = vmatpush2.msra.mxu0 0.0
  %719 = vmatprep.subr.mxu0 0.0
  %720 = vmatpush2.msra.mxu0 0.0
  %721 = vmatprep.subr.mxu0 0.0
  %722 = vmatpush2.msra.mxu0 0.0
  %723 = vmatprep.subr.mxu0 0.0
  %724 = vmatpush2.msra.mxu0 0.0
  %725 = vmatprep.mubr.f32.mxu0 0.0
  %726 = vmatmul.mubr.f32.gmra.mxu0 %v350
  %v727 = vpop.f32.mrf.mxu0
  %v728 = vadd.f32 %v346, %v727
  %v729 = vpop.f32.mrf.mxu0
  %v730 = vadd.f32 %v346, %v729
  %731 = vdwg.mxu0
  %v733 = vadd.f32 %v728, %v432
  %v734 = vadd.f32 %v730, %v434
  %v737 = vcombine.low %v733, %v734
  %s739 = scalar_lea.vmem %s7, 8
  %740 = vst [vmem:[%s739] sm:$0xff] %v737
  // Predicated region
  $region30: #{rrrb_pallas.1} parent=0 // pred_check
    _
  $region31: #{rrrb_pallas.1} parent=0 // pred_check_branch
    %742 = sbr.rel (0) target = $region33
  $region32: #{rrrb_pallas.1} parent=0 // pred_region
    _
  $region33: #{rrrb_pallas.1} parent=0 // pred_fallthru
    _
  // Predicated region
  $region34: #{rrrb_pallas.1} parent=0 // pred_check
    _
  $region35: #{rrrb_pallas.1} parent=0 // pred_check_branch
    %744 = sbr.rel (0) target = $region37
  $region36: #{rrrb_pallas.1} parent=0 // pred_region
    _
  $region37: #{rrrb_pallas.1} parent=0 // pred_fallthru
    _

</llo_original>
